<compile_context>
chip_gen: v7x
topology: tpu7x:2x2x1
jax: 0.10.0
libtpu: 0.0.40
codegen_flags: <defaults>
</compile_context>

<pallas_src>
import functools
import math

import jax
import jax.numpy as jnp
from jax.experimental import pallas as pl
from jax.experimental.pallas import tpu as pltpu


def _round_up(n, m):
    return ((n + m - 1) // m) * m


def _round_down(n, m):
    return (n // m) * m


# --------------------------------- kernel ------------------------------------
def _aam_softmax_kernel(x_ref, wt_ref, *rest, cos_m, sin_m, scale, tile_c,
                        has_labels):
    """One class tile per program.

    x_ref:   (B, E)        f32 embeddings (constant block, VMEM-resident)
    wt_ref:  (E, TILE_C)   f32 pre-transposed weight tile
    lab_ref: (B, 1)        i32 labels (only when has_labels)
    out_ref: (B, TILE_C)   f32 scaled logits for this class tile
    """
    if has_labels:
        lab_ref, out_ref = rest
    else:
        (out_ref,) = rest

    # F.normalize(x): tiny (B, E) block, recomputed per tile (negligible).
    x = x_ref[...]
    x_n = x * jax.lax.rsqrt(
        jnp.maximum(jnp.sum(x * x, axis=1, keepdims=True), 1e-24))

    # F.normalize(W) for this class tile; reduction over E = axis 0 (sublanes),
    # which lowers to plain VALU vreg adds rather than cross-lane XLU reduces.
    wt = wt_ref[...]
    w_n = wt * jax.lax.rsqrt(
        jnp.maximum(jnp.sum(wt * wt, axis=0, keepdims=True), 1e-24))

    # cosine = x_n @ w_n  -> (B, TILE_C), f32 accumulation on the MXU,
    # no transpose needed (weight arrives in (K, N) layout).
    cosine = jnp.dot(x_n, w_n, preferred_element_type=jnp.float32)

    if has_labels:
        lab = lab_ref[...]                                        # (B, 1) i32
        offset = pl.program_id(0) * tile_c
        cls_idx = jax.lax.broadcasted_iota(jnp.int32, cosine.shape, 1) + offset
        mask = cls_idx == lab                                     # one-hot (in-tile)

        # Target-class cosine per row (0 if the label lives in another tile).
        c_t = jnp.sum(jnp.where(mask, cosine, 0.0), axis=1, keepdims=True)
        c_t = jnp.clip(c_t, -1.0, 1.0)
        # cos(acos(c) + m) = c*cos_m - sqrt(1 - c^2)*sin_m   (column-only math)
        t_t = c_t * cos_m - jnp.sqrt(jnp.maximum(1.0 - c_t * c_t, 0.0)) * sin_m
        delta = (t_t - c_t) * scale                               # (B, 1)

        out_ref[...] = cosine * scale + jnp.where(mask, delta, 0.0)
    else:
        out_ref[...] = cosine * scale


# --------------------------------- wrapper -----------------------------------
def aam_softmax(x, weight, labels=None, *, margin=0.4, scale=40.0, tile_c=None):
    """x: (B, E) float, weight: (C, E) float, labels: optional (B,) ints."""
    B, E = x.shape
    C, E_w = weight.shape
    assert E == E_w

    x = jnp.asarray(x, jnp.float32)
    # Pre-transpose W in the wrapper (cheap XLA transpose once, in HBM) so the
    # kernel never emits an XLU vxpose and never holds two copies of W in VMEM.
    w_t = jnp.asarray(weight, jnp.float32).T                      # (E, C)

    # Class-tile size: lane-dense multiple of 128, large enough to amortize the
    # ~0.35 us per-grid-step overhead, small enough that double-buffered W and
    # output tiles fit comfortably in scoped VMEM on every generation
    # (v7x: 64 MiB physical, 32 MiB default scoped; v5e: 16 MiB default).
    if tile_c is None:
        budget = 16 * 1024 * 1024
        per_col = 4 * (2 * E + 4 * B)      # f32 bytes per class column (W dbl-buf + out dbl-buf + temps)
        tile_c = _round_down(max(budget // per_col, 128), 128)
        tile_c = max(128, min(tile_c, 2048, _round_up(C, 128)))
    assert tile_c % 128 == 0

    # Pad only the class dim (lane axis of the output / W tiles).  E is left
    # unpadded: a block dim equal to the full array dim is legal, and skipping
    # the pad avoids an extra full HBM read+write of the dominant array.
    C_pad = _round_up(C, tile_c)
    if C_pad != C:
        w_t = jnp.pad(w_t, ((0, 0), (0, C_pad - C)))
    n_tiles = C_pad // tile_c

    has_labels = labels is not None
    kernel = functools.partial(
        _aam_softmax_kernel,
        cos_m=math.cos(margin), sin_m=math.sin(margin),
        scale=float(scale), tile_c=tile_c, has_labels=has_labels)

    in_specs = [
        pl.BlockSpec((B, E), lambda j: (0, 0)),          # x: constant block
        pl.BlockSpec((E, tile_c), lambda j: (0, j)),     # W^T: streamed by class tile
    ]
    args = [x, w_t]
    if has_labels:
        lab = jnp.asarray(labels, jnp.int32).reshape(B, 1)
        in_specs.append(pl.BlockSpec((B, 1), lambda j: (0, 0)))
        args.append(lab)

    out_spec = pl.BlockSpec((B, tile_c), lambda j: (0, j))

    # Scoped-VMEM limit from the real tile footprint (double buffers + temps),
    # clamped well under v7x's 64 MiB physical VMEM.
    footprint = 4 * (2 * E * tile_c + 4 * B * tile_c + 2 * B * E + 2 * B)
    vmem_limit = int(min(48 * 1024 * 1024, max(8 * 1024 * 1024, 2 * footprint)))

    logits_p = pl.pallas_call(
        kernel,
        out_shape=jax.ShapeDtypeStruct((B, C_pad), jnp.float32),
        grid_spec=pltpu.PrefetchScalarGridSpec(
            num_scalar_prefetch=0,
            grid=(n_tiles,),
            in_specs=in_specs,
            out_specs=out_spec,
        ),
        compiler_params=pltpu.CompilerParams(
            dimension_semantics=("parallel",),   # class tiles independent -> megacore
            vmem_limit_bytes=vmem_limit,
        ),
    )(*args)

    return logits_p[:, :C] if C_pad != C else logits_p


# ------------------------------ pure-JAX reference ----------------------------
def aam_softmax_ref(x, weight, labels=None, *, margin=0.4, scale=40.0):
    x_n = x * jax.lax.rsqrt(
        jnp.maximum(jnp.sum(x * x, axis=1, keepdims=True), 1e-24))
    w_n = weight * jax.lax.rsqrt(
        jnp.maximum(jnp.sum(weight * weight, axis=1, keepdims=True), 1e-24))
    logits = jnp.einsum("be,ce->bc", x_n, w_n,
                        precision=jax.lax.Precision.HIGHEST)
    if labels is not None:
        c = jnp.clip(logits, -1.0, 1.0)
        target = jnp.cos(jnp.arccos(c) + margin)
        one_hot = jax.nn.one_hot(labels, weight.shape[0], dtype=logits.dtype)
        logits = logits * (1.0 - one_hot) + target * one_hot
    return logits * scale


# ------------------------------------ main ------------------------------------
if __name__ == "__main__":
    key = jax.random.PRNGKey(0)

    # Small shapes consistent with the module (embedding classifier head).
    B, EMB_DIM, N_CLASSES = 2, 192, 16
    kx, kw, kl = jax.random.split(key, 3)
    x = jax.random.normal(kx, (B, EMB_DIM), dtype=jnp.float32)
    weight = jax.random.normal(kw, (N_CLASSES, EMB_DIM),
                               dtype=jnp.float32) / math.sqrt(EMB_DIM)
    labels = jax.random.randint(kl, (B,), 0, N_CLASSES)

    logits_lab = aam_softmax(x, weight, labels)      # training path (with labels)
    logits_nolab = aam_softmax(x, weight, None)      # inference path (labels=None)
    jax.block_until_ready((logits_lab, logits_nolab))

    ref_lab = aam_softmax_ref(x, weight, labels)
    ref_nolab = aam_softmax_ref(x, weight, None)

    assert logits_lab.shape == (B, N_CLASSES)
    assert logits_nolab.shape == (B, N_CLASSES)
    assert bool(jnp.all(jnp.isfinite(logits_lab)))
    assert bool(jnp.all(jnp.isfinite(logits_nolab)))
    assert bool(jnp.allclose(logits_lab, ref_lab, atol=1e-2, rtol=1e-2))
    assert bool(jnp.allclose(logits_nolab, ref_nolab, atol=1e-2, rtol=1e-2))

    # Extra check: multi-tile class grid (forces tile_c=128, C padded to 384,
    # 3 grid steps) so the cross-tile label masking path is exercised too.
    C2 = 300
    kw2, kl2 = jax.random.split(kw)
    weight2 = jax.random.normal(kw2, (C2, EMB_DIM),
                                dtype=jnp.float32) / math.sqrt(EMB_DIM)
    labels2 = jax.random.randint(kl2, (B,), 0, C2)
    out2 = aam_softmax(x, weight2, labels2, tile_c=128)
    jax.block_until_ready(out2)
    ref2 = aam_softmax_ref(x, weight2, labels2)
    assert out2.shape == (B, C2)
    assert bool(jnp.allclose(out2, ref2, atol=1e-2, rtol=1e-2))

    print("KERNEL_OK")
</pallas_src>

<mosaic_0001>
module attributes {stable_mosaic.version = 11 : i64} {
  func.func @_aam_softmax_kernel(%arg0: i32, %arg1: memref<2x192xf32, #tpu.memory_space<vmem>>, %arg2: memref<192x128xf32, #tpu.memory_space<vmem>>, %arg3: memref<2x1xi32, #tpu.memory_space<vmem>>, %arg4: memref<2x128xf32, #tpu.memory_space<vmem>>) attributes {dimension_semantics = [#tpu.dimension_semantics<parallel>], iteration_bounds = array<i64: 1>, scalar_prefetch = 0 : i64, scratch_operands = 0 : i64, tpu.core_type = #tpu.core_type<tc>, window_params = [{pipeline_mode = #tpu.pipeline_mode<synchronous>, transform_indices = @transform_0, window_bounds = array<i64: 2, 192>}, {transform_indices = @transform_1, window_bounds = array<i64: 192, 128>}, {pipeline_mode = #tpu.pipeline_mode<synchronous>, transform_indices = @transform_2, window_bounds = array<i64: 2, 1>}, {transform_indices = @transform_3, window_bounds = array<i64: 2, 128>}]} {
    %c0 = arith.constant 0 : index
    %c0_0 = arith.constant 0 : index
    %0 = vector.load %arg1[%c0, %c0_0] : memref<2x192xf32, #tpu.memory_space<vmem>>, vector<2x192xf32>
    %1 = arith.mulf %0, %0 : vector<2x192xf32>
    %cst = arith.constant dense<0.000000e+00> : vector<2xf32>
    %2 = vector.multi_reduction <add>, %1, %cst [1] : vector<2x192xf32> to vector<2xf32>
    %3 = vector.shape_cast %2 : vector<2xf32> to vector<2x1xf32>
    %cst_1 = arith.constant 1.000000e-24 : f32
    %4 = vector.broadcast %cst_1 : f32 to vector<2x1xf32>
    %5 = arith.maximumf %3, %4 : vector<2x1xf32>
    %6 = math.rsqrt %5 : vector<2x1xf32>
    %7 = vector.broadcast %6 : vector<2x1xf32> to vector<2x192xf32>
    %8 = arith.mulf %0, %7 : vector<2x192xf32>
    %c0_2 = arith.constant 0 : index
    %c0_3 = arith.constant 0 : index
    %9 = vector.load %arg2[%c0_2, %c0_3] : memref<192x128xf32, #tpu.memory_space<vmem>>, vector<192x128xf32>
    %10 = arith.mulf %9, %9 : vector<192x128xf32>
    %cst_4 = arith.constant dense<0.000000e+00> : vector<128xf32>
    %11 = vector.multi_reduction <add>, %10, %cst_4 [0] : vector<192x128xf32> to vector<128xf32>
    %12 = vector.shape_cast %11 : vector<128xf32> to vector<1x128xf32>
    %cst_5 = arith.constant 1.000000e-24 : f32
    %13 = vector.broadcast %cst_5 : f32 to vector<1x128xf32>
    %14 = arith.maximumf %12, %13 : vector<1x128xf32>
    %15 = math.rsqrt %14 : vector<1x128xf32>
    %16 = vector.broadcast %15 : vector<1x128xf32> to vector<192x128xf32>
    %17 = arith.mulf %9, %16 : vector<192x128xf32>
    %cst_6 = arith.constant dense<0.000000e+00> : vector<2x128xf32>
    %18 = tpu.matmul %8, %17, %cst_6 {dimension_numbers = #tpu.dot_dimension_numbers<[1], [0], [0], [1], [0, 0, 1, 1], [], []>} : vector<2x192xf32>, vector<192x128xf32>, vector<2x128xf32> -> vector<2x128xf32>
    %c0_7 = arith.constant 0 : index
    %c0_8 = arith.constant 0 : index
    %19 = vector.load %arg3[%c0_7, %c0_8] : memref<2x1xi32, #tpu.memory_space<vmem>>, vector<2x1xi32>
    %c128_i32 = arith.constant 128 : i32
    %20 = arith.muli %arg0, %c128_i32 : i32
    %21 = tpu.iota {dimensions = array<i32: 1>} : vector<2x128xi32>
    %22 = vector.broadcast %20 : i32 to vector<2x128xi32>
    %23 = arith.addi %21, %22 : vector<2x128xi32>
    %24 = vector.broadcast %19 : vector<2x1xi32> to vector<2x128xi32>
    %25 = arith.cmpi eq, %23, %24 : vector<2x128xi32>
    %cst_9 = arith.constant 0.000000e+00 : f32
    %26 = vector.broadcast %cst_9 : f32 to vector<2x128xf32>
    %27 = arith.select %25, %18, %26 : vector<2x128xi1>, vector<2x128xf32>
    %cst_10 = arith.constant dense<0.000000e+00> : vector<2xf32>
    %28 = vector.multi_reduction <add>, %27, %cst_10 [1] : vector<2x128xf32> to vector<2xf32>
    %29 = vector.shape_cast %28 : vector<2xf32> to vector<2x1xf32>
    %cst_11 = arith.constant -1.000000e+00 : f32
    %cst_12 = arith.constant 1.000000e+00 : f32
    %30 = vector.broadcast %cst_11 : f32 to vector<2x1xf32>
    %31 = arith.maximumf %30, %29 : vector<2x1xf32>
    %32 = vector.broadcast %cst_12 : f32 to vector<2x1xf32>
    %33 = arith.minimumf %32, %31 : vector<2x1xf32>
    %cst_13 = arith.constant 0.921060979 : f32
    %34 = vector.broadcast %cst_13 : f32 to vector<2x1xf32>
    %35 = arith.mulf %33, %34 : vector<2x1xf32>
    %36 = arith.mulf %33, %33 : vector<2x1xf32>
    %cst_14 = arith.constant 1.000000e+00 : f32
    %37 = vector.broadcast %cst_14 : f32 to vector<2x1xf32>
    %38 = arith.subf %37, %36 : vector<2x1xf32>
    %cst_15 = arith.constant 0.000000e+00 : f32
    %39 = vector.broadcast %cst_15 : f32 to vector<2x1xf32>
    %40 = arith.maximumf %38, %39 : vector<2x1xf32>
    %41 = math.sqrt %40 : vector<2x1xf32>
    %cst_16 = arith.constant 0.389418334 : f32
    %42 = vector.broadcast %cst_16 : f32 to vector<2x1xf32>
    %43 = arith.mulf %41, %42 : vector<2x1xf32>
    %44 = arith.subf %35, %43 : vector<2x1xf32>
    %45 = arith.subf %44, %33 : vector<2x1xf32>
    %cst_17 = arith.constant 4.000000e+01 : f32
    %46 = vector.broadcast %cst_17 : f32 to vector<2x1xf32>
    %47 = arith.mulf %45, %46 : vector<2x1xf32>
    %cst_18 = arith.constant 4.000000e+01 : f32
    %48 = vector.broadcast %cst_18 : f32 to vector<2x128xf32>
    %49 = arith.mulf %18, %48 : vector<2x128xf32>
    %cst_19 = arith.constant 0.000000e+00 : f32
    %50 = vector.shape_cast %47 : vector<2x1xf32> to vector<2x1xf32>
    %51 = vector.broadcast %50 : vector<2x1xf32> to vector<2x128xf32>
    %52 = vector.broadcast %cst_19 : f32 to vector<2x128xf32>
    %53 = arith.select %25, %51, %52 : vector<2x128xi1>, vector<2x128xf32>
    %54 = arith.addf %49, %53 : vector<2x128xf32>
    %c0_20 = arith.constant 0 : index
    %c0_21 = arith.constant 0 : index
    %55 = vector.load %arg4[%c0_20, %c0_21] : memref<2x128xf32, #tpu.memory_space<vmem>>, vector<2x128xf32>
    tpu.vector_store %arg4[%c0_20, %c0_21], %54 {strides = array<i32>} : memref<2x128xf32, #tpu.memory_space<vmem>>, vector<2x128xf32>,
    return
  }
  func.func @transform_0(%arg0: i32) -> (i32, i32) {
    %c0_i32 = arith.constant 0 : i32
    %c0_i32_0 = arith.constant 0 : i32
    %c0_i32_1 = arith.constant 0 : i32
    return %c0_i32, %c0_i32_0 : i32, i32
  }
  func.func @transform_1(%arg0: i32) -> (i32, i32) {
    %c0_i32 = arith.constant 0 : i32
    %c0_i32_0 = arith.constant 0 : i32
    return %c0_i32, %arg0 : i32, i32
  }
  func.func @transform_2(%arg0: i32) -> (i32, i32) {
    %c0_i32 = arith.constant 0 : i32
    %c0_i32_0 = arith.constant 0 : i32
    %c0_i32_1 = arith.constant 0 : i32
    return %c0_i32, %c0_i32_0 : i32, i32
  }
  func.func @transform_3(%arg0: i32) -> (i32, i32) {
    %c0_i32 = arith.constant 0 : i32
    %c0_i32_0 = arith.constant 0 : i32
    return %c0_i32, %arg0 : i32, i32
  }
}

</mosaic_0001>

<llo_original>
// kernel: tpu_custom_call.1
$region0: #{tpu_custom_call.1}
  #allocation0 [shape = 'u32[]', space=smem, size = 0x4, offset = 0x4, fixed_abs, tag = 'smem constant byte address 0x4 - core index']
  #allocation1 [shape = 'u32[144,128]{1,0:T(1,128)}', space=vmem, size = 0x12000, scoped, tag = 'internal scratch']
  %s0 = inlined_call_operand.hbm [shape: f32[2,192], index: 0, kind: input, shape index: {}]
  %s1 = inlined_call_operand.hbm [shape: f32[192,128], index: 1, kind: input, shape index: {}]
  %s2 = inlined_call_operand.vmem [shape: s32[2,1], index: 2, kind: input, shape index: {}]
  %s3 = inlined_call_operand.hbm [shape: f32[2,128], index: 3, kind: output, shape index: {}]
  %s4 = sld [smem:[#allocation0]]
  $region30: #{tpu_custom_call.1} parent=0
    _
  %s6 = ssub.s32 1, %s4
  %s7 = scalar_select 0, %s6, %s4
  $region1: #{tpu_custom_call.1} parent=0
    #allocation2 [shape = 'u8[2048]{0}', space=vmem, size = 0x800, scoped, tag = 'input window, operand 0, single buffered']
    #allocation3 [shape = 's32[1]{0}', space=sflag, size = 0x4, scoped, tag = 'scoped memory for tpu_custom_call.1']
    #allocation4 [shape = 's32[1]{0}', space=sflag, size = 0x4, scoped, tag = 'scoped memory for tpu_custom_call.1']
    #allocation5 [shape = 'u8[98304]{0}', space=vmem, size = 0x18000, scoped, tag = 'input window, operand 1, single buffered']
    #allocation6 [shape = 's32[1]{0}', space=sflag, size = 0x4, scoped, tag = 'scoped memory for tpu_custom_call.1']
    #allocation7 [shape = 'u8[1024]{0}', space=vmem, size = 0x400, scoped, tag = 'output window, operand 0, single buffered']
    %8 = vsyncpa [#allocation3], 0
    %9 = vsyncpa [#allocation6], 0
    %10 = vsyncpa [#allocation4], 0
    // Predicated region
    $region2: #{tpu_custom_call.1} parent=1 // pred_check
      _
    $region3: #{tpu_custom_call.1} parent=1 // pred_check_branch
      %12 = sbr.rel (0) target = $region5
    $region4: #{tpu_custom_call.1} parent=1 // pred_region
      %s14 = ssub.s32 64, 64
      %15 = vsyncadd [#allocation3], %s14
      %s17 = sshll.u32 [#allocation2], 4
      %s18 = int_to_ptr.vmem [resolvable:$true] %s17
      %20 = dma.hbm_to_vmem [thread:$0]  %s0, 64, %s18, [#allocation3]
    $region5: #{tpu_custom_call.1} parent=1 // pred_fallthru
      _
    // Predicated region
    $region6: #{tpu_custom_call.1} parent=1 // pred_check
      _
    $region7: #{tpu_custom_call.1} parent=1 // pred_check_branch
      %22 = sbr.rel (0) target = $region9
    $region8: #{tpu_custom_call.1} parent=1 // pred_region
      %s24 = ssub.s32 3072, 3072
      %25 = vsyncadd [#allocation6], %s24
      %s26 = sshll.u32 [#allocation5], 4
      %s27 = int_to_ptr.vmem [resolvable:$true] %s26
      %32 = dma.hbm_to_vmem [thread:$0]  %s1, 3072, %s27, [#allocation6], 128, 128, 8
    $region9: #{tpu_custom_call.1} parent=1 // pred_fallthru
      _
    // Predicated region
    $region10: #{tpu_custom_call.1} parent=1 // pred_check
      _
    $region11: #{tpu_custom_call.1} parent=1 // pred_check_branch
      %34 = sbr.rel (0) target = $region13
    $region12: #{tpu_custom_call.1} parent=1 // pred_region
      _
    $region13: #{tpu_custom_call.1} parent=1 // pred_fallthru
      _
    // Predicated region
    $region14: #{tpu_custom_call.1} parent=1 // pred_check
      _
    $region15: #{tpu_custom_call.1} parent=1 // pred_check_branch
      %36 = sbr.rel (0) target = $region17
    $region16: #{tpu_custom_call.1} parent=1 // pred_region
      %37 = dma.done [#allocation3], 64
    $region17: #{tpu_custom_call.1} parent=1 // pred_fallthru
      _
    // Predicated region
    $region18: #{tpu_custom_call.1} parent=1 // pred_check
      _
    $region19: #{tpu_custom_call.1} parent=1 // pred_check_branch
      %39 = sbr.rel (0) target = $region21
    $region20: #{tpu_custom_call.1} parent=1 // pred_region
      %40 = dma.done [#allocation6], 3072
    $region21: #{tpu_custom_call.1} parent=1 // pred_fallthru
      _
    %v41 = vld [vmem:[#allocation2] sm:$0xf]
    %v42 = vmul.f32 %v41, %v41
    %v45 = vunpack.c.l.s4 1983009808
    %v46 = vunpack.c.0.s8 %v45
    %v47 = vlaneseq
    %v48 = vshrl.u32 %v47, 7
    %v49 = vsub.s32 %v46, %v48
    %v50 = vrot.slane %v42, %v49
    %v51 = vcombine.high %v50, %v50
    %vm54 = vcmask 1041408
    %v55 = vsel %vm54, %v50, 0.0
    %vm56 = vcmask 517120
    %v57 = vsel %vm56, %v51, 0.0
    %v58 = vadd.f32 %v55, %v57
    %59 = vadd.xlane.f32.xlu0 %v58
    %v60 = vpop.xlane.xlu0 %59
    %v61 = vmax.f32 %v60, 1e-24
    %v62 = vrsqrt.pop %v61
    %v65 = vunpack.c.l.s4 269488144
    %v66 = vunpack.c.0.s8 %v65
    %v67 = vlaneseq
    %v68 = vshrl.u32 %v67, 7
    %v69 = vsub.s32 %v66, %v68
    %v70 = vrot.slane %v62, %v69
    %v72 = vmul.f32 %v41, %v70
    %v73 = vld [vmem:[#allocation5] sm:$0xff]
    %v74 = vld [vmem:[#allocation5 + $0x8] sm:$0xff]
    %v75 = vld [vmem:[#allocation5 + $0x10] sm:$0xff]
    %v76 = vld [vmem:[#allocation5 + $0x18] sm:$0xff]
    %v77 = vld [vmem:[#allocation5 + $0x20] sm:$0xff]
    %v78 = vld [vmem:[#allocation5 + $0x28] sm:$0xff]
    %v79 = vld [vmem:[#allocation5 + $0x30] sm:$0xff]
    %v80 = vld [vmem:[#allocation5 + $0x38] sm:$0xff]
    %v81 = vld [vmem:[#allocation5 + $0x40] sm:$0xff]
    %v82 = vld [vmem:[#allocation5 + $0x48] sm:$0xff]
    %v83 = vld [vmem:[#allocation5 + $0x50] sm:$0xff]
    %v84 = vld [vmem:[#allocation5 + $0x58] sm:$0xff]
    %v85 = vld [vmem:[#allocation5 + $0x60] sm:$0xff]
    %v86 = vld [vmem:[#allocation5 + $0x68] sm:$0xff]
    %v87 = vld [vmem:[#allocation5 + $0x70] sm:$0xff]
    %v88 = vld [vmem:[#allocation5 + $0x78] sm:$0xff]
    %v89 = vld [vmem:[#allocation5 + $0x80] sm:$0xff]
    %v90 = vld [vmem:[#allocation5 + $0x88] sm:$0xff]
    %v91 = vld [vmem:[#allocation5 + $0x90] sm:$0xff]
    %v92 = vld [vmem:[#allocation5 + $0x98] sm:$0xff]
    %v93 = vld [vmem:[#allocation5 + $0xa0] sm:$0xff]
    %v94 = vld [vmem:[#allocation5 + $0xa8] sm:$0xff]
    %v95 = vld [vmem:[#allocation5 + $0xb0] sm:$0xff]
    %v96 = vld [vmem:[#allocation5 + $0xb8] sm:$0xff]
    %v97 = vmul.f32 %v73, %v73
    %v98 = vmul.f32 %v74, %v74
    %v99 = vmul.f32 %v75, %v75
    %v100 = vmul.f32 %v76, %v76
    %v101 = vmul.f32 %v77, %v77
    %v102 = vmul.f32 %v78, %v78
    %v103 = vmul.f32 %v79, %v79
    %v104 = vmul.f32 %v80, %v80
    %v105 = vmul.f32 %v81, %v81
    %v106 = vmul.f32 %v82, %v82
    %v107 = vmul.f32 %v83, %v83
    %v108 = vmul.f32 %v84, %v84
    %v109 = vmul.f32 %v85, %v85
    %v110 = vmul.f32 %v86, %v86
    %v111 = vmul.f32 %v87, %v87
    %v112 = vmul.f32 %v88, %v88
    %v113 = vmul.f32 %v89, %v89
    %v114 = vmul.f32 %v90, %v90
    %v115 = vmul.f32 %v91, %v91
    %v116 = vmul.f32 %v92, %v92
    %v117 = vmul.f32 %v93, %v93
    %v118 = vmul.f32 %v94, %v94
    %v119 = vmul.f32 %v95, %v95
    %v120 = vmul.f32 %v96, %v96
    %v121 = vadd.f32 %v97, %v98
    %v122 = vadd.f32 %v121, %v99
    %v123 = vadd.f32 %v122, %v100
    %v124 = vadd.f32 %v123, %v101
    %v125 = vadd.f32 %v124, %v102
    %v126 = vadd.f32 %v125, %v103
    %v127 = vadd.f32 %v126, %v104
    %v128 = vadd.f32 %v127, %v105
    %v129 = vadd.f32 %v128, %v106
    %v130 = vadd.f32 %v129, %v107
    %v131 = vadd.f32 %v130, %v108
    %v132 = vadd.f32 %v131, %v109
    %v133 = vadd.f32 %v132, %v110
    %v134 = vadd.f32 %v133, %v111
    %v135 = vadd.f32 %v134, %v112
    %v136 = vadd.f32 %v135, %v113
    %v137 = vadd.f32 %v136, %v114
    %v138 = vadd.f32 %v137, %v115
    %v139 = vadd.f32 %v138, %v116
    %v140 = vadd.f32 %v139, %v117
    %v141 = vadd.f32 %v140, %v118
    %v142 = vadd.f32 %v141, %v119
    %v143 = vadd.f32 %v142, %v120
    %v144 = vrot.slane %v143, 4
    %v145 = vadd.f32 %v143, %v144
    %v146 = vrot.slane %v145, 2
    %v147 = vadd.f32 %v145, %v146
    %v148 = vrot.slane %v147, 1
    %v149 = vadd.f32 %v147, %v148
    %v150 = vmax.f32 %v149, 1e-24
    %v151 = vrsqrt.pop %v150
    %v152 = vmul.f32 %v73, %v151
    %v153 = vmul.f32 %v74, %v151
    %v154 = vmul.f32 %v75, %v151
    %v155 = vmul.f32 %v76, %v151
    %v156 = vmul.f32 %v77, %v151
    %v157 = vmul.f32 %v78, %v151
    %v158 = vmul.f32 %v79, %v151
    %v159 = vmul.f32 %v80, %v151
    %v160 = vmul.f32 %v81, %v151
    %v161 = vmul.f32 %v82, %v151
    %v162 = vmul.f32 %v83, %v151
    %v163 = vmul.f32 %v84, %v151
    %v164 = vmul.f32 %v85, %v151
    %v165 = vmul.f32 %v86, %v151
    %v166 = vmul.f32 %v87, %v151
    %v167 = vmul.f32 %v88, %v151
    %v168 = vmul.f32 %v89, %v151
    %v169 = vmul.f32 %v90, %v151
    %v170 = vmul.f32 %v91, %v151
    %v171 = vmul.f32 %v92, %v151
    %v172 = vmul.f32 %v93, %v151
    %v173 = vmul.f32 %v94, %v151
    %v174 = vmul.f32 %v95, %v151
    %v175 = vmul.f32 %v96, %v151
    %v178 = vunpack.c.l.s4 1983009808
    %v179 = vunpack.c.0.s8 %v178
    %v180 = vlaneseq
    %v181 = vshrl.u32 %v180, 7
    %v182 = vsub.s32 %v179, %v181
    %v183 = vrot.slane %v72, %v182
    %v184 = vcombine.high %v183, %v183
    %vm186 = vcmask 523264
    %v187 = vsel %vm186, %v184, 0
    %189 = vmatprep.subr.mxu0 0.0
    %190 = vmatpush1.msra.mxu0 %v152
    %191 = vmatprep.subr.mxu0 0.0
    %192 = vmatpush1.msra.mxu0 %v153
    %193 = vmatprep.subr.mxu0 0.0
    %194 = vmatpush1.msra.mxu0 %v154
    %195 = vmatprep.subr.mxu0 0.0
    %196 = vmatpush1.msra.mxu0 %v155
    %197 = vmatprep.subr.mxu0 0.0
    %198 = vmatpush1.msra.mxu0 %v156
    %199 = vmatprep.subr.mxu0 0.0
    %200 = vmatpush1.msra.mxu0 %v157
    %201 = vmatprep.subr.mxu0 0.0
    %202 = vmatpush1.msra.mxu0 %v158
    %203 = vmatprep.subr.mxu0 0.0
    %204 = vmatpush1.msra.mxu0 %v159
    %205 = vmatprep.subr.mxu0 0.0
    %206 = vmatpush1.msra.mxu0 %v160
    %207 = vmatprep.subr.mxu0 0.0
    %208 = vmatpush1.msra.mxu0 %v161
    %209 = vmatprep.subr.mxu0 0.0
    %210 = vmatpush1.msra.mxu0 %v162
    %211 = vmatprep.subr.mxu0 0.0
    %212 = vmatpush1.msra.mxu0 %v163
    %213 = vmatprep.subr.mxu0 0.0
    %214 = vmatpush1.msra.mxu0 %v164
    %215 = vmatprep.subr.mxu0 0.0
    %216 = vmatpush1.msra.mxu0 %v165
    %217 = vmatprep.subr.mxu0 0.0
    %218 = vmatpush1.msra.mxu0 %v166
    %219 = vmatprep.subr.mxu0 0.0
    %220 = vmatpush1.msra.mxu0 %v167
    %221 = vmatprep.subr.mxu0 0.0
    %222 = vmatpush1.msra.mxu0 %v168
    %223 = vmatprep.subr.mxu0 0.0
    %224 = vmatpush1.msra.mxu0 %v169
    %225 = vmatprep.subr.mxu0 0.0
    %226 = vmatpush1.msra.mxu0 %v170
    %227 = vmatprep.subr.mxu0 0.0
    %228 = vmatpush1.msra.mxu0 %v171
    %229 = vmatprep.subr.mxu0 0.0
    %230 = vmatpush1.msra.mxu0 %v172
    %231 = vmatprep.subr.mxu0 0.0
    %232 = vmatpush1.msra.mxu0 %v173
    %233 = vmatprep.subr.mxu0 0.0
    %234 = vmatpush1.msra.mxu0 %v174
    %235 = vmatprep.subr.mxu0 0.0
    %236 = vmatpush1.msra.mxu0 %v175
    %237 = vmatprep.subr.mxu0 0.0
    %238 = vmatpush1.msra.mxu0 0.0
    %239 = vmatprep.subr.mxu0 0.0
    %240 = vmatpush1.msra.mxu0 0.0
    %241 = vmatprep.subr.mxu0 0.0
    %242 = vmatpush1.msra.mxu0 0.0
    %243 = vmatprep.subr.mxu0 0.0
    %244 = vmatpush1.msra.mxu0 0.0
    %245 = vmatprep.subr.mxu0 0.0
    %246 = vmatpush1.msra.mxu0 0.0
    %247 = vmatprep.subr.mxu0 0.0
    %248 = vmatpush1.msra.mxu0 0.0
    %249 = vmatprep.subr.mxu0 0.0
    %250 = vmatpush1.msra.mxu0 0.0
    %251 = vmatprep.subr.mxu0 0.0
    %252 = vmatpush1.msra.mxu0 0.0
    %253 = vmatprep.mubr.f32.mxu0 %v187
    %254 = vmatmul.mubr.f32.gmra.mrb[0].mxu0 %v183
    %v255 = vpop.f32.mrb[0].mxu0
    %v256 = vadd.f32 0.0, %v255
    %v257 = vpop.f32.mrb[0].mxu0
    %258 = vdwg.mxu0
    %v259 = vld [vmem:[%s2] sm:$0x3]
    %s260 = smul.u32 0, 128
    %v261 = vlaneseq
    %v262 = vand.u32 %v261, 127
    %v263 = vstv %s260
    %v264 = vadd.s32 %v262, %v263
    %265 = vset.pattern.permute.xlu0 0
    %266 = vperm.xlu0 %265, %v259
    %v267 = vpop.permute.xlu0 %266
    %vm268 = vcmp.eq.s32.totalorder %v264, %v267
    %v269 = vsel %vm268, %v256, 0.0
    %v270 = vsel %vm54, %v269, 0.0
    %271 = vadd.xlane.f32.xlu0 %v270
    %v272 = vpop.xlane.xlu0 %271
    %v273 = vmax.f32 %v272, -1.0
    %v274 = vmin.f32 %v273, 1.0
    %v275 = vmul.f32 %v274, 0.921061
    %v276 = vmul.f32 %v274, %v274
    %v277 = vsub.f32 1.0, %v276
    %v278 = vmax.f32 %v277, 0.0
    %v279 = vrsqrt.pop %v278
    %v280 = vmul.f32 %v278, %v279
    %vm281 = vcmp.eq.f32.partialorder %v278, inf
    %v282 = vsel %vm281, %v278, %v280
    %vm283 = vcmp.eq.f32.partialorder %v278, 0.0
    %v284 = vand.u32 %v278, 2147483648
    %v285 = vsel %vm283, %v284, %v282
    %v286 = vmul.f32 %v285, 0.38941833
    %v287 = vsub.f32 %v275, %v286
    %v288 = vsub.f32 %v287, %v274
    %v289 = vmul.f32 %v288, 40.0
    %v290 = vmul.f32 %v256, 40.0
    %v291 = vsel %vm268, %v289, 0.0
    %v292 = vadd.f32 %v290, %v291
    %293 = vst [vmem:[#allocation7] sm:$0x3] %v292
    // Predicated region
    $region22: #{tpu_custom_call.1} parent=1 // pred_check
      _
    $region23: #{tpu_custom_call.1} parent=1 // pred_check_branch
      %295 = sbr.rel (0) target = $region25
    $region24: #{tpu_custom_call.1} parent=1 // pred_region
      %s297 = ssub.s32 32, 32
      %298 = vsyncadd [#allocation4], %s297
      %s300 = sshll.u32 [#allocation7], 4
      %s301 = int_to_ptr.vmem [resolvable:$true] %s300
      %303 = dma.vmem_to_hbm [thread:$0]  %s301, 32, %s3, [#allocation4]
    $region25: #{tpu_custom_call.1} parent=1 // pred_fallthru
      _
    // Predicated region
    $region26: #{tpu_custom_call.1} parent=1 // pred_check
      _
    $region27: #{tpu_custom_call.1} parent=1 // pred_check_branch
      %305 = sbr.rel (0) target = $region29
    $region28: #{tpu_custom_call.1} parent=1 // pred_region
      %306 = dma.done [#allocation4], 32
    $region29: #{tpu_custom_call.1} parent=1 // pred_fallthru
      _
    %307 = vsyncpa [#allocation3], 1
    %308 = vsyncpa [#allocation6], 1
    %309 = vsyncpa [#allocation4], 1

</llo_original>
